<compile_context>
chip_gen: v7x
topology: tpu7x:2x2x1
jax: 0.10.0
libtpu: 0.0.40
codegen_flags: <defaults>
</compile_context>

<pallas_src>
import functools

import jax
import jax.numpy as jnp
from jax.experimental import pallas as pl
from jax.experimental.pallas import tpu as pltpu


def vanet_kernel(x_ref, w1_ref, b1_ref, wq_ref, bq_ref, q_ref, *,
                 state_dim, action_dim):
    # ---- fc1 on the VPU: state_dim broadcast FMAs (K=3 would waste the MXU).
    x = x_ref[...]                                    # (TM, S)
    w1 = w1_ref[...]                                  # (S, H)
    h = b1_ref[...]                                   # (1, H) -> broadcasts
    for k in range(state_dim):                        # static unroll (S tiny)
        h = h + x[:, k:k + 1] * w1[k:k + 1, :]
    h = jnp.maximum(h, 0.0)                           # (TM, H)  ReLU

    # ---- folded dueling head: one clean (TM,H)x(H,128) MXU matmul + bias.
    # Columns [0, A) already hold Q = V + A - mean(A); columns >= A are pad.
    y = jnp.dot(h, wq_ref[...], preferred_element_type=jnp.float32)
    y = y + bq_ref[...]                               # (TM, NPAD)

    # Store only the real action columns (narrow, lane-masked store).
    q_ref[...] = y[:, :action_dim].astype(q_ref.dtype)


def fold_vanet_params(w1, b1, wa, ba, wv, bv):
    """One-time fold of the dueling combine into the head weights.

    Q = V + A - mean(A)
      = h @ (wa - mean(wa, axis=1) + wv) + (ba + bv - mean(ba))
    """
    H, A = wa.shape
    wq = wa - jnp.mean(wa, axis=1, keepdims=True) + wv          # (H, A)
    bq = ba + bv - jnp.mean(ba, axis=1, keepdims=True)          # (1, A)
    # Lane-pad the head to 128 so the MXU matmul shape is clean; the kernel
    # only stores columns [0, A).
    npad = max(128, pl.cdiv(A, 128) * 128)
    wq_pad = jnp.zeros((H, npad), jnp.float32).at[:, :A].set(wq)
    bq_pad = jnp.zeros((1, npad), jnp.float32).at[:, :A].set(bq)
    return w1, b1, wq_pad, bq_pad


def vanet_forward(x, w1, b1, wq_pad, bq_pad, *, action_dim, block_batch=1024):
    B, S = x.shape
    H = w1.shape[1]
    NPAD = wq_pad.shape[1]
    A = action_dim

    # Batch tiling: TM multiple of 8, capped at block_batch; when B is large
    # enough, force >= 2 grid steps so both v7x TensorCores get work.
    B8 = max(pl.cdiv(B, 8) * 8, 8)
    if B8 >= 16:
        tm_cap = max(((B8 // 2) // 8) * 8, 8)
    else:
        tm_cap = B8
    TM = max(min(block_batch, tm_cap), 8)
    B_pad = pl.cdiv(B, TM) * TM
    if B_pad != B:
        x = jnp.pad(x, ((0, B_pad - B), (0, 0)))
    grid = (B_pad // TM,)

    kernel = functools.partial(vanet_kernel, state_dim=S, action_dim=A)
    q_pad = pl.pallas_call(
        kernel,
        out_shape=jax.ShapeDtypeStruct((B_pad, A), jnp.float32),
        grid=grid,
        in_specs=[
            pl.BlockSpec((TM, S), lambda i: (i, 0)),       # x: per batch tile
            pl.BlockSpec((S, H), lambda i: (0, 0)),        # weights stay
            pl.BlockSpec((1, H), lambda i: (0, 0)),        #   VMEM-resident
            pl.BlockSpec((H, NPAD), lambda i: (0, 0)),
            pl.BlockSpec((1, NPAD), lambda i: (0, 0)),
        ],
        out_specs=pl.BlockSpec((TM, A), lambda i: (i, 0)),  # narrow output
        compiler_params=pltpu.CompilerParams(
            dimension_semantics=("parallel",)),              # dual-TC on v7x
    )(x, w1, b1, wq_pad, bq_pad)

    return q_pad[:B]


def reference_forward(x, w1, b1, wa, ba, wv, bv):
    h = jnp.maximum(x @ w1 + b1, 0.0)
    a = h @ wa + ba
    v = h @ wv + bv
    return v + a - jnp.mean(a, axis=1, keepdims=True)


if __name__ == "__main__":
    # Shapes implied by the module: Pendulum-v1 state_dim=3, hidden_dim=128,
    # action_dim=11.  Small batch for the test.
    batch, state_dim, hidden_dim, action_dim = 8, 3, 128, 11

    key = jax.random.PRNGKey(0)
    k_x, k_w1, k_b1, k_wa, k_ba, k_wv, k_bv = jax.random.split(key, 7)

    x = jax.random.normal(k_x, (batch, state_dim), dtype=jnp.float32)
    # Parameters stored as (in, out) so the kernel computes x @ W + b
    # (PyTorch Linear weight transposed).
    w1 = jax.random.normal(k_w1, (state_dim, hidden_dim), jnp.float32) * 0.1
    b1 = jax.random.normal(k_b1, (1, hidden_dim), jnp.float32) * 0.1
    wa = jax.random.normal(k_wa, (hidden_dim, action_dim), jnp.float32) * 0.1
    ba = jax.random.normal(k_ba, (1, action_dim), jnp.float32) * 0.1
    wv = jax.random.normal(k_wv, (hidden_dim, 1), jnp.float32) * 0.1
    bv = jax.random.normal(k_bv, (1, 1), jnp.float32) * 0.1

    # One-time parameter fold (done at init/update time, not per forward).
    fw1, fb1, wq_pad, bq_pad = fold_vanet_params(w1, b1, wa, ba, wv, bv)
    fw1, fb1, wq_pad, bq_pad = jax.block_until_ready(
        (fw1, fb1, wq_pad, bq_pad))

    q = vanet_forward(x, fw1, fb1, wq_pad, bq_pad, action_dim=action_dim)
    q = jax.block_until_ready(q)

    q_ref = reference_forward(x, w1, b1, wa, ba, wv, bv)
    assert q.shape == (batch, action_dim)
    assert jnp.allclose(q, q_ref, atol=1e-5, rtol=1e-5)

    print("KERNEL_OK")
</pallas_src>

<mosaic_0001>
module attributes {stable_mosaic.version = 11 : i64} {
  func.func @vanet_kernel(%arg0: i32, %arg1: memref<8x3xf32, #tpu.memory_space<vmem>>, %arg2: memref<3x128xf32, #tpu.memory_space<vmem>>, %arg3: memref<1x128xf32, #tpu.memory_space<vmem>>, %arg4: memref<128x128xf32, #tpu.memory_space<vmem>>, %arg5: memref<1x128xf32, #tpu.memory_space<vmem>>, %arg6: memref<8x11xf32, #tpu.memory_space<vmem>>) attributes {dimension_semantics = [#tpu.dimension_semantics<parallel>], iteration_bounds = array<i64: 1>, scalar_prefetch = 0 : i64, scratch_operands = 0 : i64, tpu.core_type = #tpu.core_type<tc>, window_params = [{transform_indices = @transform_0, window_bounds = array<i64: 8, 3>}, {pipeline_mode = #tpu.pipeline_mode<synchronous>, transform_indices = @transform_1, window_bounds = array<i64: 3, 128>}, {pipeline_mode = #tpu.pipeline_mode<synchronous>, transform_indices = @transform_2, window_bounds = array<i64: 1, 128>}, {pipeline_mode = #tpu.pipeline_mode<synchronous>, transform_indices = @transform_3, window_bounds = array<i64: 128, 128>}, {pipeline_mode = #tpu.pipeline_mode<synchronous>, transform_indices = @transform_4, window_bounds = array<i64: 1, 128>}, {transform_indices = @transform_5, window_bounds = array<i64: 8, 11>}]} {
    %c0 = arith.constant 0 : index
    %c0_0 = arith.constant 0 : index
    %0 = vector.load %arg1[%c0, %c0_0] : memref<8x3xf32, #tpu.memory_space<vmem>>, vector<8x3xf32>
    %c0_1 = arith.constant 0 : index
    %c0_2 = arith.constant 0 : index
    %1 = vector.load %arg2[%c0_1, %c0_2] : memref<3x128xf32, #tpu.memory_space<vmem>>, vector<3x128xf32>
    %c0_3 = arith.constant 0 : index
    %c0_4 = arith.constant 0 : index
    %2 = vector.load %arg3[%c0_3, %c0_4] : memref<1x128xf32, #tpu.memory_space<vmem>>, vector<1x128xf32>
    %3 = vector.extract_strided_slice %0 {offsets = [0, 0], sizes = [8, 1], strides = [1, 1]} : vector<8x3xf32> to vector<8x1xf32>
    %4 = vector.extract_strided_slice %1 {offsets = [0, 0], sizes = [1, 128], strides = [1, 1]} : vector<3x128xf32> to vector<1x128xf32>
    %5 = vector.broadcast %3 : vector<8x1xf32> to vector<8x128xf32>
    %6 = vector.broadcast %4 : vector<1x128xf32> to vector<8x128xf32>
    %7 = arith.mulf %5, %6 : vector<8x128xf32>
    %8 = vector.broadcast %2 : vector<1x128xf32> to vector<8x128xf32>
    %9 = arith.addf %8, %7 : vector<8x128xf32>
    %10 = vector.extract_strided_slice %0 {offsets = [0, 1], sizes = [8, 1], strides = [1, 1]} : vector<8x3xf32> to vector<8x1xf32>
    %11 = vector.extract_strided_slice %1 {offsets = [1, 0], sizes = [1, 128], strides = [1, 1]} : vector<3x128xf32> to vector<1x128xf32>
    %12 = vector.broadcast %10 : vector<8x1xf32> to vector<8x128xf32>
    %13 = vector.broadcast %11 : vector<1x128xf32> to vector<8x128xf32>
    %14 = arith.mulf %12, %13 : vector<8x128xf32>
    %15 = arith.addf %9, %14 : vector<8x128xf32>
    %16 = vector.extract_strided_slice %0 {offsets = [0, 2], sizes = [8, 1], strides = [1, 1]} : vector<8x3xf32> to vector<8x1xf32>
    %17 = vector.extract_strided_slice %1 {offsets = [2, 0], sizes = [1, 128], strides = [1, 1]} : vector<3x128xf32> to vector<1x128xf32>
    %18 = vector.broadcast %16 : vector<8x1xf32> to vector<8x128xf32>
    %19 = vector.broadcast %17 : vector<1x128xf32> to vector<8x128xf32>
    %20 = arith.mulf %18, %19 : vector<8x128xf32>
    %21 = arith.addf %15, %20 : vector<8x128xf32>
    %cst = arith.constant 0.000000e+00 : f32
    %22 = vector.broadcast %cst : f32 to vector<8x128xf32>
    %23 = arith.maximumf %21, %22 : vector<8x128xf32>
    %c0_5 = arith.constant 0 : index
    %c0_6 = arith.constant 0 : index
    %24 = vector.load %arg4[%c0_5, %c0_6] : memref<128x128xf32, #tpu.memory_space<vmem>>, vector<128x128xf32>
    %cst_7 = arith.constant dense<0.000000e+00> : vector<8x128xf32>
    %25 = tpu.matmul %23, %24, %cst_7 {dimension_numbers = #tpu.dot_dimension_numbers<[1], [0], [0], [1], [0, 0, 1, 1], [], []>} : vector<8x128xf32>, vector<128x128xf32>, vector<8x128xf32> -> vector<8x128xf32>
    %c0_8 = arith.constant 0 : index
    %c0_9 = arith.constant 0 : index
    %26 = vector.load %arg5[%c0_8, %c0_9] : memref<1x128xf32, #tpu.memory_space<vmem>>, vector<1x128xf32>
    %27 = vector.broadcast %26 : vector<1x128xf32> to vector<8x128xf32>
    %28 = arith.addf %25, %27 : vector<8x128xf32>
    %29 = vector.extract_strided_slice %28 {offsets = [0, 0], sizes = [8, 11], strides = [1, 1]} : vector<8x128xf32> to vector<8x11xf32>
    %c0_10 = arith.constant 0 : index
    %c0_11 = arith.constant 0 : index
    %30 = vector.load %arg6[%c0_10, %c0_11] : memref<8x11xf32, #tpu.memory_space<vmem>>, vector<8x11xf32>
    tpu.vector_store %arg6[%c0_10, %c0_11], %29 {strides = array<i32>} : memref<8x11xf32, #tpu.memory_space<vmem>>, vector<8x11xf32>,
    return
  }
  func.func @transform_0(%arg0: i32) -> (i32, i32) {
    %c0_i32 = arith.constant 0 : i32
    %c0_i32_0 = arith.constant 0 : i32
    return %arg0, %c0_i32 : i32, i32
  }
  func.func @transform_1(%arg0: i32) -> (i32, i32) {
    %c0_i32 = arith.constant 0 : i32
    %c0_i32_0 = arith.constant 0 : i32
    %c0_i32_1 = arith.constant 0 : i32
    return %c0_i32, %c0_i32_0 : i32, i32
  }
  func.func @transform_2(%arg0: i32) -> (i32, i32) {
    %c0_i32 = arith.constant 0 : i32
    %c0_i32_0 = arith.constant 0 : i32
    %c0_i32_1 = arith.constant 0 : i32
    return %c0_i32, %c0_i32_0 : i32, i32
  }
  func.func @transform_3(%arg0: i32) -> (i32, i32) {
    %c0_i32 = arith.constant 0 : i32
    %c0_i32_0 = arith.constant 0 : i32
    %c0_i32_1 = arith.constant 0 : i32
    return %c0_i32, %c0_i32_0 : i32, i32
  }
  func.func @transform_4(%arg0: i32) -> (i32, i32) {
    %c0_i32 = arith.constant 0 : i32
    %c0_i32_0 = arith.constant 0 : i32
    %c0_i32_1 = arith.constant 0 : i32
    return %c0_i32, %c0_i32_0 : i32, i32
  }
  func.func @transform_5(%arg0: i32) -> (i32, i32) {
    %c0_i32 = arith.constant 0 : i32
    %c0_i32_0 = arith.constant 0 : i32
    return %arg0, %c0_i32 : i32, i32
  }
}

</mosaic_0001>

<llo_original>
// kernel: tpu_custom_call.1
$region0: #{tpu_custom_call.1}
  #allocation0 [shape = 'u32[]', space=smem, size = 0x4, offset = 0x4, fixed_abs, tag = 'smem constant byte address 0x4 - core index']
  #allocation1 [shape = 'u32[144,128]{1,0:T(1,128)}', space=vmem, size = 0x12000, scoped, tag = 'internal scratch']
  %s0 = inlined_call_operand.vmem [shape: f32[8,3], index: 0, kind: input, shape index: {}]
  %s1 = inlined_call_operand.vmem [shape: f32[3,128], index: 1, kind: input, shape index: {}]
  %s2 = inlined_call_operand.vmem [shape: f32[1,128], index: 2, kind: input, shape index: {}]
  %s3 = inlined_call_operand.hbm [shape: f32[128,128], index: 3, kind: input, shape index: {}]
  %s4 = inlined_call_operand.vmem [shape: f32[1,128], index: 4, kind: input, shape index: {}]
  %s5 = inlined_call_operand.hbm [shape: f32[8,11], index: 5, kind: output, shape index: {}]
  %s6 = sld [smem:[#allocation0]]
  $region34: #{tpu_custom_call.1} parent=0
    _
  %s8 = ssub.s32 1, %s6
  %s9 = scalar_select 0, %s8, %s6
  $region1: #{tpu_custom_call.1} parent=0
    #allocation2 [shape = 'u8[65536]{0}', space=vmem, size = 0x10000, scoped, tag = 'input window, operand 3, single buffered']
    #allocation3 [shape = 's32[1]{0}', space=sflag, size = 0x4, scoped, tag = 'scoped memory for tpu_custom_call.1']
    #allocation4 [shape = 's32[1]{0}', space=sflag, size = 0x4, scoped, tag = 'scoped memory for tpu_custom_call.1']
    #allocation5 [shape = 'u8[4096]{0}', space=vmem, size = 0x1000, scoped, tag = 'output window, operand 0, single buffered']
    %10 = vsyncpa [#allocation3], 0
    %11 = vsyncpa [#allocation4], 0
    // Predicated region
    $region2: #{tpu_custom_call.1} parent=1 // pred_check
      _
    $region3: #{tpu_custom_call.1} parent=1 // pred_check_branch
      %13 = sbr.rel (0) target = $region5
    $region4: #{tpu_custom_call.1} parent=1 // pred_region
      _
    $region5: #{tpu_custom_call.1} parent=1 // pred_fallthru
      _
    // Predicated region
    $region6: #{tpu_custom_call.1} parent=1 // pred_check
      _
    $region7: #{tpu_custom_call.1} parent=1 // pred_check_branch
      %15 = sbr.rel (0) target = $region9
    $region8: #{tpu_custom_call.1} parent=1 // pred_region
      _
    $region9: #{tpu_custom_call.1} parent=1 // pred_fallthru
      _
    // Predicated region
    $region10: #{tpu_custom_call.1} parent=1 // pred_check
      _
    $region11: #{tpu_custom_call.1} parent=1 // pred_check_branch
      %17 = sbr.rel (0) target = $region13
    $region12: #{tpu_custom_call.1} parent=1 // pred_region
      _
    $region13: #{tpu_custom_call.1} parent=1 // pred_fallthru
      _
    // Predicated region
    $region14: #{tpu_custom_call.1} parent=1 // pred_check
      _
    $region15: #{tpu_custom_call.1} parent=1 // pred_check_branch
      %19 = sbr.rel (0) target = $region17
    $region16: #{tpu_custom_call.1} parent=1 // pred_region
      %s21 = ssub.s32 2048, 2048
      %22 = vsyncadd [#allocation3], %s21
      %s23 = sshll.u32 [#allocation2], 4
      %s24 = int_to_ptr.vmem [resolvable:$true] %s23
      %29 = dma.hbm_to_vmem [thread:$0]  %s3, 2048, %s24, [#allocation3], 128, 128, 8
    $region17: #{tpu_custom_call.1} parent=1 // pred_fallthru
      _
    // Predicated region
    $region18: #{tpu_custom_call.1} parent=1 // pred_check
      _
    $region19: #{tpu_custom_call.1} parent=1 // pred_check_branch
      %31 = sbr.rel (0) target = $region21
    $region20: #{tpu_custom_call.1} parent=1 // pred_region
      _
    $region21: #{tpu_custom_call.1} parent=1 // pred_fallthru
      _
    // Predicated region
    $region22: #{tpu_custom_call.1} parent=1 // pred_check
      _
    $region23: #{tpu_custom_call.1} parent=1 // pred_check_branch
      %33 = sbr.rel (0) target = $region25
    $region24: #{tpu_custom_call.1} parent=1 // pred_region
      %34 = dma.done [#allocation3], 2048
    $region25: #{tpu_custom_call.1} parent=1 // pred_fallthru
      _
    %v35 = vld [vmem:[%s0] sm:$0xff]
    %v36 = vld [vmem:[%s1] sm:$0x7]
    %v37 = vld [vmem:[%s2] sm:$0x1]
    %39 = vset.pattern.permute.xlu0 0
    %40 = vperm.xlu0 %39, %v35
    %v41 = vpop.permute.xlu0 %40
    %v43 = vlaneseq
    %v44 = vshrl.u32 %v43, 7
    %v45 = vsub.s32 0, %v44
    %v46 = vrot.slane %v36, %v45
    %v47 = vmul.f32 %v41, %v46
    %v49 = vlaneseq
    %v50 = vshrl.u32 %v49, 7
    %v51 = vsub.s32 0, %v50
    %v52 = vrot.slane %v37, %v51
    %v54 = vadd.f32 %v52, %v47
    %55 = vset.pattern.permute.xlu0 1
    %56 = vperm.xlu0 %55, %v35
    %v57 = vpop.permute.xlu0 %56
    %v59 = vlaneseq
    %v60 = vshrl.u32 %v59, 7
    %v61 = vsub.s32 1, %v60
    %v62 = vrot.slane %v36, %v61
    %v63 = vmul.f32 %v57, %v62
    %v64 = vadd.f32 %v54, %v63
    %65 = vset.pattern.permute.xlu0 2
    %66 = vperm.xlu0 %65, %v35
    %v67 = vpop.permute.xlu0 %66
    %v69 = vlaneseq
    %v70 = vshrl.u32 %v69, 7
    %v71 = vsub.s32 2, %v70
    %v72 = vrot.slane %v36, %v71
    %v73 = vmul.f32 %v67, %v72
    %v74 = vadd.f32 %v64, %v73
    %v75 = vmax.f32 %v74, 0.0
    %v76 = vld [vmem:[#allocation2] sm:$0xff]
    %v77 = vld [vmem:[#allocation2 + $0x8] sm:$0xff]
    %v78 = vld [vmem:[#allocation2 + $0x10] sm:$0xff]
    %v79 = vld [vmem:[#allocation2 + $0x18] sm:$0xff]
    %v80 = vld [vmem:[#allocation2 + $0x20] sm:$0xff]
    %v81 = vld [vmem:[#allocation2 + $0x28] sm:$0xff]
    %v82 = vld [vmem:[#allocation2 + $0x30] sm:$0xff]
    %v83 = vld [vmem:[#allocation2 + $0x38] sm:$0xff]
    %v84 = vld [vmem:[#allocation2 + $0x40] sm:$0xff]
    %v85 = vld [vmem:[#allocation2 + $0x48] sm:$0xff]
    %v86 = vld [vmem:[#allocation2 + $0x50] sm:$0xff]
    %v87 = vld [vmem:[#allocation2 + $0x58] sm:$0xff]
    %v88 = vld [vmem:[#allocation2 + $0x60] sm:$0xff]
    %v89 = vld [vmem:[#allocation2 + $0x68] sm:$0xff]
    %v90 = vld [vmem:[#allocation2 + $0x70] sm:$0xff]
    %v91 = vld [vmem:[#allocation2 + $0x78] sm:$0xff]
    %v92 = vld [vmem:[%s4] sm:$0x1]
    %v94 = vlaneseq
    %v95 = vshrl.u32 %v94, 7
    %v96 = vsub.s32 0, %v95
    %v97 = vrot.slane %v92, %v96
    %99 = vmatprep.subr.mxu0 0.0
    %100 = vmatpush1.msra.mxu0 %v76
    %101 = vmatprep.subr.mxu0 0.0
    %102 = vmatpush1.msra.mxu0 %v77
    %103 = vmatprep.subr.mxu0 0.0
    %104 = vmatpush1.msra.mxu0 %v78
    %105 = vmatprep.subr.mxu0 0.0
    %106 = vmatpush1.msra.mxu0 %v79
    %107 = vmatprep.subr.mxu0 0.0
    %108 = vmatpush1.msra.mxu0 %v80
    %109 = vmatprep.subr.mxu0 0.0
    %110 = vmatpush1.msra.mxu0 %v81
    %111 = vmatprep.subr.mxu0 0.0
    %112 = vmatpush1.msra.mxu0 %v82
    %113 = vmatprep.subr.mxu0 0.0
    %114 = vmatpush1.msra.mxu0 %v83
    %115 = vmatprep.subr.mxu0 0.0
    %116 = vmatpush1.msra.mxu0 %v84
    %117 = vmatprep.subr.mxu0 0.0
    %118 = vmatpush1.msra.mxu0 %v85
    %119 = vmatprep.subr.mxu0 0.0
    %120 = vmatpush1.msra.mxu0 %v86
    %121 = vmatprep.subr.mxu0 0.0
    %122 = vmatpush1.msra.mxu0 %v87
    %123 = vmatprep.subr.mxu0 0.0
    %124 = vmatpush1.msra.mxu0 %v88
    %125 = vmatprep.subr.mxu0 0.0
    %126 = vmatpush1.msra.mxu0 %v89
    %127 = vmatprep.subr.mxu0 0.0
    %128 = vmatpush1.msra.mxu0 %v90
    %129 = vmatprep.subr.mxu0 0.0
    %130 = vmatpush1.msra.mxu0 %v91
    %131 = vmatprep.subr.mxu0 0.0
    %132 = vmatpush1.msra.mxu0 0.0
    %133 = vmatprep.subr.mxu0 0.0
    %134 = vmatpush1.msra.mxu0 0.0
    %135 = vmatprep.subr.mxu0 0.0
    %136 = vmatpush1.msra.mxu0 0.0
    %137 = vmatprep.subr.mxu0 0.0
    %138 = vmatpush1.msra.mxu0 0.0
    %139 = vmatprep.subr.mxu0 0.0
    %140 = vmatpush1.msra.mxu0 0.0
    %141 = vmatprep.subr.mxu0 0.0
    %142 = vmatpush1.msra.mxu0 0.0
    %143 = vmatprep.subr.mxu0 0.0
    %144 = vmatpush1.msra.mxu0 0.0
    %145 = vmatprep.subr.mxu0 0.0
    %146 = vmatpush1.msra.mxu0 0.0
    %147 = vmatprep.subr.mxu0 0.0
    %148 = vmatpush1.msra.mxu0 0.0
    %149 = vmatprep.subr.mxu0 0.0
    %150 = vmatpush1.msra.mxu0 0.0
    %151 = vmatprep.subr.mxu0 0.0
    %152 = vmatpush1.msra.mxu0 0.0
    %153 = vmatprep.subr.mxu0 0.0
    %154 = vmatpush1.msra.mxu0 0.0
    %155 = vmatprep.subr.mxu0 0.0
    %156 = vmatpush1.msra.mxu0 0.0
    %157 = vmatprep.subr.mxu0 0.0
    %158 = vmatpush1.msra.mxu0 0.0
    %159 = vmatprep.subr.mxu0 0.0
    %160 = vmatpush1.msra.mxu0 0.0
    %161 = vmatprep.subr.mxu0 0.0
    %162 = vmatpush1.msra.mxu0 0.0
    %163 = vmatprep.mubr.f32.mxu0 0.0
    %164 = vmatmul.mubr.f32.gmra.mrb[0].mxu0 %v75
    %v165 = vpop.f32.mrb[0].mxu0
    %v166 = vadd.f32 %v97, %v165
    %v167 = vpop.f32.mrb[0].mxu0
    %168 = vdwg.mxu0
    %vm169 = vcmask 89088
    %170 = vst.msk [vmem:[#allocation5] sm:$0xff] %vm169, %v166
    // Predicated region
    $region26: #{tpu_custom_call.1} parent=1 // pred_check
      _
    $region27: #{tpu_custom_call.1} parent=1 // pred_check_branch
      %172 = sbr.rel (0) target = $region29
    $region28: #{tpu_custom_call.1} parent=1 // pred_region
      %s174 = ssub.s32 128, 128
      %175 = vsyncadd [#allocation4], %s174
      %s177 = sshll.u32 [#allocation5], 4
      %s178 = int_to_ptr.vmem [resolvable:$true] %s177
      %180 = dma.vmem_to_hbm [thread:$0]  %s178, 128, %s5, [#allocation4]
    $region29: #{tpu_custom_call.1} parent=1 // pred_fallthru
      _
    // Predicated region
    $region30: #{tpu_custom_call.1} parent=1 // pred_check
      _
    $region31: #{tpu_custom_call.1} parent=1 // pred_check_branch
      %182 = sbr.rel (0) target = $region33
    $region32: #{tpu_custom_call.1} parent=1 // pred_region
      %183 = dma.done [#allocation4], 128
    $region33: #{tpu_custom_call.1} parent=1 // pred_fallthru
      _
    %184 = vsyncpa [#allocation3], 1
    %185 = vsyncpa [#allocation4], 1

</llo_original>
